<compile_context>
chip_gen: v7x
topology: tpu7x:2x2x1
jax: 0.10.0
libtpu: 0.0.40
codegen_flags: <defaults>
</compile_context>

<pallas_src>
import jax
import jax.numpy as jnp
from jax.experimental import pallas as pl
from jax.experimental.pallas import tpu as pltpu


def _round_up(a, m):
    return (a + m - 1) // m * m


def _ordinal_head_kernel(x_ref, w_ref, hi_ref, lo_ref, o_ref):
    # x_ref : (TN, CHW)    flattened (C*H*W) feature block, lane-dense
    # w_ref : (1, CHW)     fc weight broadcast over spatial positions, 1/(H*W) folded in
    # hi_ref: (1, K_pad)   upper cutpoints (fc bias folded in; +BIG pad)
    # lo_ref: (1, K_pad)   lower cutpoints (fc bias folded in; -BIG first, +BIG pad)
    # o_ref : (TN, K_pad)  ordinal class probabilities (padded cols == 0)
    x = x_ref[...].astype(jnp.float32)
    # Single MXU contraction replaces the (pool-reduce + weighted-reduce) XLU work:
    #   y[n] = sum_{c,p} x[n, c*HW+p] * fc_w[c] / (H*W)
    y = jax.lax.dot_general(
        x, w_ref[...],
        dimension_numbers=(((1,), (1,)), ((), ())),   # contract last dims (A @ B^T)
        preferred_element_type=jnp.float32)           # (TN, 1)
    # sigmoid(c - y) = 1 / (1 + exp(y - c)); exp lands on the EUP slot.
    s_hi = 1.0 / (1.0 + jnp.exp(y - hi_ref[...]))     # (TN, K_pad)
    s_lo = 1.0 / (1.0 + jnp.exp(y - lo_ref[...]))     # (TN, K_pad)
    o_ref[...] = (s_hi - s_lo).astype(o_ref.dtype)


def ordinal_efficientnet_head(x, fc_w, fc_b, cutpoints, num_classes, *,
                              tn=None, vmem_budget_bytes=40 << 20):
    """Ordinal logistic head on the final feature map.

    x: (N, C, H, W); fc_w: (C,); fc_b: (); cutpoints: (num_classes-1,).

    tn is auto-sized from `vmem_budget_bytes` (double-buffered x block plus
    headroom for the in-kernel f32 copy).  The default 40 MiB is safe on every
    generation (v7x has 64 MiB physical VMEM); on v5e/v6e (128 MiB physical)
    pass a larger budget (e.g. 80-96 MiB) to get tn ~ 32-64 for C ~ 1280.
    """
    N, C, H, W = x.shape
    hw = H * W
    chw = C * hw
    out_dtype = x.dtype

    # --- layout: free reshape to (N, C*H*W); no jnp.pad / no extra HBM pass ---
    x2 = x.reshape(N, chw)

    # --- batch tile sizing ----------------------------------------------------
    sub = max(8, 32 // max(1, x2.dtype.itemsize))   # sublane tile: 8 f32 / 16 bf16
    row_bytes = chw * x2.dtype.itemsize
    if tn is None:
        # 2 pipeline buffers of x + headroom for the in-kernel f32 working copy.
        tn = int(vmem_budget_bytes // max(3 * row_bytes, 1))
        tn = max(sub, (tn // sub) * sub)
        # keep >= 2 grid steps so ("parallel",) feeds both v7x TensorCores and
        # the DMA pipeline has more than one stage.
        tn = min(tn, max(sub, _round_up(-(-N // 2), sub)))
    tn = max(sub, (tn // sub) * sub)
    if tn > N:                                      # block may not exceed the array dim
        tn = N if N < sub else (N // sub) * sub
    # Ragged edge: partial last block.  OOB input rows read garbage and OOB
    # output rows are dropped by Pallas -- harmless since rows are independent.
    grid = (pl.cdiv(N, tn),)

    # --- clamp cutpoints: c[i] <- clamp(c[i], -2, c_orig[i+1]) ----------------
    # Matches the sequential in-place torch loop because each step reads the
    # *not yet clamped* upper neighbour.
    c = cutpoints.astype(jnp.float32)
    c = c.at[:-1].set(jnp.clip(c[:-1], -2.0, c[1:]))

    # --- lane-dense class padding; fold the fc bias into the cutpoints --------
    # p_k = sigmoid(hi_k - y) - sigmoid(lo_k - y) with
    #   hi = [c_0, ..., c_{K-2}, +BIG, +BIG, ...]
    #   lo = [-BIG, c_0, ..., c_{K-2}, +BIG, ...]
    # so padded columns give exactly 0 and no in-kernel concat/shift is needed.
    k_pad = _round_up(num_classes, 128)
    big = jnp.float32(1e30)
    hi = jnp.full((k_pad,), big, jnp.float32).at[: num_classes - 1].set(c)
    lo = jnp.full((k_pad,), big, jnp.float32).at[1:num_classes].set(c).at[0].set(-big)
    b = fc_b.astype(jnp.float32)
    hi = (hi - b).reshape(1, k_pad)
    lo = (lo - b).reshape(1, k_pad)

    # --- fold the 1/(H*W) pool scale into the fc weight, broadcast over HW ----
    w_flat = jnp.repeat(fc_w.astype(jnp.float32) / hw, hw).reshape(1, chw)

    # --- explicit, adaptive scoped-VMEM limit ----------------------------------
    x_block_bytes = tn * row_bytes
    vmem_limit = int(max(32 << 20, min(3 * x_block_bytes + (4 << 20), 100 << 20)))

    out = pl.pallas_call(
        _ordinal_head_kernel,
        out_shape=jax.ShapeDtypeStruct((N, k_pad), jnp.float32),
        grid_spec=pltpu.PrefetchScalarGridSpec(
            num_scalar_prefetch=0,
            grid=grid,
            in_specs=[
                pl.BlockSpec((tn, chw), lambda i: (i, 0)),
                pl.BlockSpec((1, chw), lambda i: (0, 0)),     # resident fc weight
                pl.BlockSpec((1, k_pad), lambda i: (0, 0)),   # resident cutpoints (hi)
                pl.BlockSpec((1, k_pad), lambda i: (0, 0)),   # resident cutpoints (lo)
            ],
            out_specs=pl.BlockSpec((tn, k_pad), lambda i: (i, 0)),
        ),
        compiler_params=pltpu.CompilerParams(
            dimension_semantics=("parallel",),                # megacore over batch tiles
            vmem_limit_bytes=vmem_limit,
        ),
    )(x2, w_flat, hi, lo)

    return out[:, :num_classes].astype(out_dtype)


# ----------------------------- pure-JAX reference -----------------------------
def _clamp_cutpoints_reference(c):
    # Literal transcription of the in-place PyTorch loop:
    #   for i in range(len(c) - 1): c[i].clamp_(-2, c[i + 1])
    for i in range(c.shape[0] - 1):
        c = c.at[i].set(jnp.clip(c[i], -2.0, c[i + 1]))
    return c


def reference_forward(x, fc_w, fc_b, cutpoints):
    c = _clamp_cutpoints_reference(cutpoints.astype(jnp.float32))
    pooled = jnp.mean(x.astype(jnp.float32), axis=(2, 3))              # (N, C)
    y = pooled @ fc_w.astype(jnp.float32).reshape(-1, 1) + fc_b        # (N, 1)
    s = 1.0 / (1.0 + jnp.exp(y - c[None, :]))                          # sigmoid(c - y)
    return jnp.concatenate(
        [s[:, :1], s[:, 1:] - s[:, :-1], 1.0 - s[:, -1:]], axis=1)     # (N, K)


if __name__ == "__main__":
    key = jax.random.PRNGKey(0)
    k_x, k_w, k_b, k_c = jax.random.split(key, 4)

    # Small, module-consistent shapes: 16 batch rows (2 grid steps at tn=8),
    # num_features C=32, 16x16 final feature map, 10 ordinal classes.
    N, C, H, W = 16, 32, 16, 16
    num_classes = 10

    x = jax.random.normal(k_x, (N, C, H, W), dtype=jnp.float32)
    bound = 1.0 / jnp.sqrt(C)
    fc_w = jax.random.uniform(k_w, (C,), jnp.float32, -bound, bound)   # Linear(C, 1) weight
    fc_b = jax.random.uniform(k_b, (), jnp.float32, -bound, bound)     # Linear(C, 1) bias
    # spacecutter 'ordered' cutpoint init plus a little noise.
    M = num_classes - 1
    cutpoints = (jnp.arange(M, dtype=jnp.float32) - M / 2.0
                 + 0.1 * jax.random.normal(k_c, (M,), dtype=jnp.float32))

    out = ordinal_efficientnet_head(x, fc_w, fc_b, cutpoints, num_classes)
    out = jax.block_until_ready(out)

    ref = reference_forward(x, fc_w, fc_b, cutpoints)
    assert out.shape == (N, num_classes)
    # Tolerance allows for the MXU f32 contraction rounding differently from the
    # XLA reference reduction order; real layout/semantics bugs are O(1e-2..1).
    assert jnp.allclose(out, ref, atol=2e-4, rtol=1e-3), "mismatch vs reference"

    print("KERNEL_OK")
</pallas_src>

<mosaic_0001>
module attributes {stable_mosaic.version = 11 : i64} {
  func.func @_ordinal_head_kernel(%arg0: i32, %arg1: memref<8x8192xf32, #tpu.memory_space<vmem>>, %arg2: memref<1x8192xf32, #tpu.memory_space<vmem>>, %arg3: memref<1x128xf32, #tpu.memory_space<vmem>>, %arg4: memref<1x128xf32, #tpu.memory_space<vmem>>, %arg5: memref<8x128xf32, #tpu.memory_space<vmem>>) attributes {dimension_semantics = [#tpu.dimension_semantics<parallel>], iteration_bounds = array<i64: 2>, scalar_prefetch = 0 : i64, scratch_operands = 0 : i64, tpu.core_type = #tpu.core_type<tc>, window_params = [{transform_indices = @transform_0, window_bounds = array<i64: 8, 8192>}, {pipeline_mode = #tpu.pipeline_mode<synchronous>, transform_indices = @transform_1, window_bounds = array<i64: 1, 8192>}, {pipeline_mode = #tpu.pipeline_mode<synchronous>, transform_indices = @transform_2, window_bounds = array<i64: 1, 128>}, {pipeline_mode = #tpu.pipeline_mode<synchronous>, transform_indices = @transform_3, window_bounds = array<i64: 1, 128>}, {transform_indices = @transform_4, window_bounds = array<i64: 8, 128>}]} {
    %c0 = arith.constant 0 : index
    %c0_0 = arith.constant 0 : index
    %0 = vector.load %arg1[%c0, %c0_0] : memref<8x8192xf32, #tpu.memory_space<vmem>>, vector<8x8192xf32>
    %c0_1 = arith.constant 0 : index
    %c0_2 = arith.constant 0 : index
    %1 = vector.load %arg2[%c0_1, %c0_2] : memref<1x8192xf32, #tpu.memory_space<vmem>>, vector<1x8192xf32>
    %cst = arith.constant dense<0.000000e+00> : vector<8x1xf32>
    %2 = tpu.matmul %0, %1, %cst {dimension_numbers = #tpu.dot_dimension_numbers<[1], [1], [0], [0], [0, 0, 1, 0], [], []>} : vector<8x8192xf32>, vector<1x8192xf32>, vector<8x1xf32> -> vector<8x1xf32>
    %c0_3 = arith.constant 0 : index
    %c0_4 = arith.constant 0 : index
    %3 = vector.load %arg3[%c0_3, %c0_4] : memref<1x128xf32, #tpu.memory_space<vmem>>, vector<1x128xf32>
    %4 = vector.broadcast %2 : vector<8x1xf32> to vector<8x128xf32>
    %5 = vector.broadcast %3 : vector<1x128xf32> to vector<8x128xf32>
    %6 = arith.subf %4, %5 : vector<8x128xf32>
    %7 = math.exp %6 : vector<8x128xf32>
    %cst_5 = arith.constant 1.000000e+00 : f32
    %8 = vector.broadcast %cst_5 : f32 to vector<8x128xf32>
    %9 = arith.addf %8, %7 : vector<8x128xf32>
    %cst_6 = arith.constant 1.000000e+00 : f32
    %10 = vector.broadcast %cst_6 : f32 to vector<8x128xf32>
    %11 = arith.divf %10, %9 : vector<8x128xf32>
    %c0_7 = arith.constant 0 : index
    %c0_8 = arith.constant 0 : index
    %12 = vector.load %arg4[%c0_7, %c0_8] : memref<1x128xf32, #tpu.memory_space<vmem>>, vector<1x128xf32>
    %13 = vector.broadcast %2 : vector<8x1xf32> to vector<8x128xf32>
    %14 = vector.broadcast %12 : vector<1x128xf32> to vector<8x128xf32>
    %15 = arith.subf %13, %14 : vector<8x128xf32>
    %16 = math.exp %15 : vector<8x128xf32>
    %cst_9 = arith.constant 1.000000e+00 : f32
    %17 = vector.broadcast %cst_9 : f32 to vector<8x128xf32>
    %18 = arith.addf %17, %16 : vector<8x128xf32>
    %cst_10 = arith.constant 1.000000e+00 : f32
    %19 = vector.broadcast %cst_10 : f32 to vector<8x128xf32>
    %20 = arith.divf %19, %18 : vector<8x128xf32>
    %21 = arith.subf %11, %20 : vector<8x128xf32>
    %c0_11 = arith.constant 0 : index
    %c0_12 = arith.constant 0 : index
    %22 = vector.load %arg5[%c0_11, %c0_12] : memref<8x128xf32, #tpu.memory_space<vmem>>, vector<8x128xf32>
    tpu.vector_store %arg5[%c0_11, %c0_12], %21 {strides = array<i32>} : memref<8x128xf32, #tpu.memory_space<vmem>>, vector<8x128xf32>,
    return
  }
  func.func @transform_0(%arg0: i32) -> (i32, i32) {
    %c0_i32 = arith.constant 0 : i32
    %c0_i32_0 = arith.constant 0 : i32
    return %arg0, %c0_i32 : i32, i32
  }
  func.func @transform_1(%arg0: i32) -> (i32, i32) {
    %c0_i32 = arith.constant 0 : i32
    %c0_i32_0 = arith.constant 0 : i32
    %c0_i32_1 = arith.constant 0 : i32
    return %c0_i32, %c0_i32_0 : i32, i32
  }
  func.func @transform_2(%arg0: i32) -> (i32, i32) {
    %c0_i32 = arith.constant 0 : i32
    %c0_i32_0 = arith.constant 0 : i32
    %c0_i32_1 = arith.constant 0 : i32
    return %c0_i32, %c0_i32_0 : i32, i32
  }
  func.func @transform_3(%arg0: i32) -> (i32, i32) {
    %c0_i32 = arith.constant 0 : i32
    %c0_i32_0 = arith.constant 0 : i32
    %c0_i32_1 = arith.constant 0 : i32
    return %c0_i32, %c0_i32_0 : i32, i32
  }
  func.func @transform_4(%arg0: i32) -> (i32, i32) {
    %c0_i32 = arith.constant 0 : i32
    %c0_i32_0 = arith.constant 0 : i32
    return %arg0, %c0_i32 : i32, i32
  }
}

</mosaic_0001>

<llo_original>
// kernel: tpu_custom_call.1
$region0: #{tpu_custom_call.1}
  #allocation0 [shape = 'u32[]', space=smem, size = 0x4, offset = 0x4, fixed_abs, tag = 'smem constant byte address 0x4 - core index']
  #allocation1 [shape = 'u32[144,128]{1,0:T(1,128)}', space=vmem, size = 0x12000, scoped, tag = 'internal scratch']
  %s0 = inlined_call_operand.hbm [shape: f32[16,8192], index: 0, kind: input, shape index: {}]
  %s1 = inlined_call_operand.hbm [shape: f32[1,8192], index: 1, kind: input, shape index: {}]
  %s2 = inlined_call_operand.vmem [shape: f32[1,128], index: 2, kind: input, shape index: {}]
  %s3 = inlined_call_operand.vmem [shape: f32[1,128], index: 3, kind: input, shape index: {}]
  %s4 = inlined_call_operand.hbm [shape: f32[16,128], index: 4, kind: output, shape index: {}]
  %s5 = sld [smem:[#allocation0]]
  $region57: #{tpu_custom_call.1} parent=0
    _
  %s7 = ssub.s32 1, %s5
  %s8 = scalar_select 0, %s7, %s5
  $region1: #{tpu_custom_call.1} parent=0
    #allocation2 [shape = 'u8[524288]{0}', space=vmem, size = 0x80000, scoped, tag = 'input window, operand 0']
    #allocation3 [shape = 's32[2]{0}', space=sflag, size = 0x8, scoped, tag = 'scoped memory for tpu_custom_call.1']
    #allocation4 [shape = 's32[2]{0}', space=sflag, size = 0x8, scoped, tag = 'scoped memory for tpu_custom_call.1']
    #allocation5 [shape = 'u8[32768]{0}', space=vmem, size = 0x8000, scoped, tag = 'input window, operand 1, single buffered']
    #allocation6 [shape = 's32[1]{0}', space=sflag, size = 0x4, scoped, tag = 'scoped memory for tpu_custom_call.1']
    #allocation7 [shape = 'u8[8192]{0}', space=vmem, size = 0x2000, scoped, tag = 'output window, operand 0']
    %9 = vsyncpa [#allocation3], 0
    %s10 = scalar_lea.sflag [#allocation3], 1
    %11 = vsyncpa %s10, 0
    %12 = vsyncpa [#allocation6], 0
    %13 = vsyncpa [#allocation4], 0
    %s14 = scalar_lea.sflag [#allocation4], 1
    %15 = vsyncpa %s14, 0
    loop: start=0, step=1, limit=4
    $region2: #{tpu_custom_call.1} parent=1 // loop_pre_header
      _
    $region3: #{tpu_custom_call.1} parent=1 // loop_header
      %s17 = sphi 0, %s21
      %p18 = scmp.ge.s32.totalorder %s17, 4
      %s27 = sphi 0, %s29
      %s30 = sphi 0, %s27
      %s31 = sphi 0, %s30
      %s47 = sphi 0, %s31
      %s51 = sphi 0, %s51
      %s53 = sphi 0, %s51
      %s54 = sphi 0, %s53
      %s68 = sphi 0, %s54
      %s72 = sphi 0, %s72
      %s74 = sphi 0, %s72
      %s75 = sphi 0, %s74
      %s89 = sphi 0, %s75
      %s93 = sphi 0, %s93
      %s95 = sphi 0, %s93
      %s96 = sphi 0, %s95
      %s110 = sphi 0, %s96
      %s116 = sphi 0, %s118
      %s119 = sphi 0, %s116
      %s120 = sphi 0, %s119
      %s136 = sphi 0, %s120
    $region4: #{tpu_custom_call.1} parent=1 // loop_header_branch
      %20 = sbr.rel (%p18) target = $region8
    $region5: #{tpu_custom_call.1} parent=1 // loop_body
      %s22 = ssub.s32 %s17, 1
      %s23 = ssub.s32 %s17, 2
      %s24 = sadd.s32 %s17, 1
      %s25 = ssub.s32 %s17, %s24
      %p26 = scmp.eq.s32.totalorder %s25, 0
      %s28 = sadd.s32 %s27, 1
      %s29 = scalar_select %p26, %s27, %s28
      %p32 = pneg %p26
      %p33 = scmp.eq.s32.totalorder %s17, 1
      %p34 = por %p32, %p33
      %p35 = scmp.ne.s32.totalorder %s27, %s30
      %p36 = scmp.eq.s32.totalorder %s17, 0
      %p37 = por %p35, %p36
      %p38 = scmp.ne.s32.totalorder %s27, %s30
      %p39 = scmp.eq.s32.totalorder %s22, 1
      %p40 = por %p38, %p39
      %p41 = scmp.ne.s32.totalorder %s30, %s31
      %p42 = scmp.eq.s32.totalorder %s22, 0
      %p43 = por %p41, %p42
      %p44 = scmp.ne.s32.totalorder %s30, %s31
      %p45 = scmp.eq.s32.totalorder %s23, 1
      %p46 = por %p44, %p45
      %p48 = scmp.ne.s32.totalorder %s31, %s47
      %p49 = scmp.eq.s32.totalorder %s23, 0
      %p50 = por %p48, %p49
      %s52 = sadd.s32 %s51, 1
      %p55 = scmp.eq.s32.totalorder %s17, 1
      %p56 = scmp.ne.s32.totalorder %s51, %s53
      %p57 = scmp.eq.s32.totalorder %s17, 0
      %p58 = por %p56, %p57
      %p59 = scmp.ne.s32.totalorder %s51, %s53
      %p60 = scmp.eq.s32.totalorder %s22, 1
      %p61 = por %p59, %p60
      %p62 = scmp.ne.s32.totalorder %s53, %s54
      %p63 = scmp.eq.s32.totalorder %s22, 0
      %p64 = por %p62, %p63
      %p65 = scmp.ne.s32.totalorder %s53, %s54
      %p66 = scmp.eq.s32.totalorder %s23, 1
      %p67 = por %p65, %p66
      %p69 = scmp.ne.s32.totalorder %s54, %s68
      %p70 = scmp.eq.s32.totalorder %s23, 0
      %p71 = por %p69, %p70
      %s73 = sadd.s32 %s72, 1
      %p76 = scmp.eq.s32.totalorder %s17, 1
      %p77 = scmp.ne.s32.totalorder %s72, %s74
      %p78 = scmp.eq.s32.totalorder %s17, 0
      %p79 = por %p77, %p78
      %p80 = scmp.ne.s32.totalorder %s72, %s74
      %p81 = scmp.eq.s32.totalorder %s22, 1
      %p82 = por %p80, %p81
      %p83 = scmp.ne.s32.totalorder %s74, %s75
      %p84 = scmp.eq.s32.totalorder %s22, 0
      %p85 = por %p83, %p84
      %p86 = scmp.ne.s32.totalorder %s74, %s75
      %p87 = scmp.eq.s32.totalorder %s23, 1
      %p88 = por %p86, %p87
      %p90 = scmp.ne.s32.totalorder %s75, %s89
      %p91 = scmp.eq.s32.totalorder %s23, 0
      %p92 = por %p90, %p91
      %s94 = sadd.s32 %s93, 1
      %p97 = scmp.eq.s32.totalorder %s17, 1
      %p98 = scmp.ne.s32.totalorder %s93, %s95
      %p99 = scmp.eq.s32.totalorder %s17, 0
      %p100 = por %p98, %p99
      %p101 = scmp.ne.s32.totalorder %s93, %s95
      %p102 = scmp.eq.s32.totalorder %s22, 1
      %p103 = por %p101, %p102
      %p104 = scmp.ne.s32.totalorder %s95, %s96
      %p105 = scmp.eq.s32.totalorder %s22, 0
      %p106 = por %p104, %p105
      %p107 = scmp.ne.s32.totalorder %s95, %s96
      %p108 = scmp.eq.s32.totalorder %s23, 1
      %p109 = por %p107, %p108
      %p111 = scmp.ne.s32.totalorder %s96, %s110
      %p112 = scmp.eq.s32.totalorder %s23, 0
      %p113 = por %p111, %p112
      %s114 = ssub.s32 %s17, %s24
      %p115 = scmp.eq.s32.totalorder %s114, 0
      %s117 = sadd.s32 %s116, 1
      %s118 = scalar_select %p115, %s116, %s117
      %p121 = pneg %p115
      %p122 = scmp.eq.s32.totalorder %s17, 1
      %p123 = por %p121, %p122
      %p124 = scmp.ne.s32.totalorder %s116, %s119
      %p125 = scmp.eq.s32.totalorder %s17, 0
      %p126 = por %p124, %p125
      %p127 = scmp.ne.s32.totalorder %s116, %s119
      %p128 = scmp.eq.s32.totalorder %s22, 1
      %p129 = por %p127, %p128
      %p130 = scmp.ne.s32.totalorder %s119, %s120
      %p131 = scmp.eq.s32.totalorder %s22, 0
      %p132 = por %p130, %p131
      %p133 = scmp.ne.s32.totalorder %s119, %s120
      %p134 = scmp.eq.s32.totalorder %s23, 1
      %p135 = por %p133, %p134
      %p137 = scmp.ne.s32.totalorder %s120, %s136
      %p138 = scmp.eq.s32.totalorder %s23, 0
      %p139 = por %p137, %p138
      %p140 = scmp.le.s32.totalorder 1, %s17
      %p141 = scmp.lt.s32.totalorder %s17, 3
      %p142 = pnand %p140, %p141
      %p143 = pneg %p142
      // Predicated region
      $region9: #{tpu_custom_call.1} parent=5 // pred_check
        _
      $region10: #{tpu_custom_call.1} parent=5 // pred_check_branch
        %145 = sbr.rel (%p142) target = $region12
      $region11: #{tpu_custom_call.1} parent=5 // pred_region
        %s146 = ssub.s32 %s17, 1
        // Predicated region
        $region13: #{tpu_custom_call.1} parent=11 // pred_check
          %p147 = pneg %p64
        $region14: #{tpu_custom_call.1} parent=11 // pred_check_branch
          %149 = sbr.rel (%p147) target = $region16
        $region15: #{tpu_custom_call.1} parent=11 // pred_region
          %s151 = ssub.s32 1024, 1024
          %152 = vsyncadd [#allocation6], %s151
          %s154 = sshll.u32 [#allocation5], 4
          %s155 = int_to_ptr.vmem [resolvable:$true] %s154
          %157 = dma.hbm_to_vmem [thread:$0]  %s1, 1024, %s155, [#allocation6]
        $region16: #{tpu_custom_call.1} parent=11 // pred_fallthru
          _
        // Predicated region
        $region17: #{tpu_custom_call.1} parent=11 // pred_check
          %p158 = pneg %p85
        $region18: #{tpu_custom_call.1} parent=11 // pred_check_branch
          %160 = sbr.rel (%p158) target = $region20
        $region19: #{tpu_custom_call.1} parent=11 // pred_region
          _
        $region20: #{tpu_custom_call.1} parent=11 // pred_fallthru
          _
        // Predicated region
        $region21: #{tpu_custom_call.1} parent=11 // pred_check
          %p161 = pneg %p106
        $region22: #{tpu_custom_call.1} parent=11 // pred_check_branch
          %163 = sbr.rel (%p161) target = $region24
        $region23: #{tpu_custom_call.1} parent=11 // pred_region
          _
        $region24: #{tpu_custom_call.1} parent=11 // pred_fallthru
          _
      $region12: #{tpu_custom_call.1} parent=5 // pred_fallthru
        _
      %p164 = scmp.lt.s32.totalorder %s17, 2
      // Predicated region
      $region25: #{tpu_custom_call.1} parent=5 // pred_check
        %p165 = pneg %p164
      $region26: #{tpu_custom_call.1} parent=5 // pred_check_branch
        %167 = sbr.rel (%p165) target = $region28
      $region27: #{tpu_custom_call.1} parent=5 // pred_region
        // Predicated region
        $region29: #{tpu_custom_call.1} parent=27 // pred_check
          %p168 = pneg %p37
        $region30: #{tpu_custom_call.1} parent=27 // pred_check_branch
          %170 = sbr.rel (%p168) target = $region32
        $region31: #{tpu_custom_call.1} parent=27 // pred_region
          %s171 = sand.u32 %s27, 1
          %s172 = scalar_lea.sflag [#allocation3], %s171
          %s173 = sand.u32 %s27, 1
          %s174 = smul.addr %s173, 512
          %s175 = scalar_lea.vmem [#allocation2], %s174
          %s177 = ssub.s32 8192, 8192
          %178 = vsyncadd %s172, %s177
          %s179 = smul.addr %s17, 64
          %s180 = smul.addr %s179, 128
          %s181 = scalar_lea.hbm %s0, %s180
          %s183 = sshll.u32 %s175, 4
          %s184 = int_to_ptr.vmem [resolvable:$true] %s183
          %186 = dma.hbm_to_vmem [thread:$0]  %s181, 8192, %s184, %s172
        $region32: #{tpu_custom_call.1} parent=27 // pred_fallthru
          _
      $region28: #{tpu_custom_call.1} parent=5 // pred_fallthru
        _
      %p187 = scmp.le.s32.totalorder 1, %s17
      %p188 = scmp.lt.s32.totalorder %s17, 3
      %p189 = pnand %p187, %p188
      %p190 = pneg %p189
      // Predicated region
      $region33: #{tpu_custom_call.1} parent=5 // pred_check
        _
      $region34: #{tpu_custom_call.1} parent=5 // pred_check_branch
        %192 = sbr.rel (%p189) target = $region36
      $region35: #{tpu_custom_call.1} parent=5 // pred_region
        %s193 = ssub.s32 %s17, 1
        %s194 = sand.u32 %s30, 1
        %s195 = scalar_lea.sflag [#allocation3], %s194
        %s196 = sand.u32 %s30, 1
        %s197 = smul.addr %s196, 512
        %s198 = scalar_lea.vmem [#allocation2], %s197
        // Predicated region
        $region37: #{tpu_custom_call.1} parent=35 // pred_check
          %p199 = pneg %p43
        $region38: #{tpu_custom_call.1} parent=35 // pred_check_branch
          %201 = sbr.rel (%p199) target = $region40
        $region39: #{tpu_custom_call.1} parent=35 // pred_region
          %202 = dma.done %s195, 8192
        $region40: #{tpu_custom_call.1} parent=35 // pred_fallthru
          _
        // Predicated region
        $region41: #{tpu_custom_call.1} parent=35 // pred_check
          %p203 = pneg %p64
        $region42: #{tpu_custom_call.1} parent=35 // pred_check_branch
          %205 = sbr.rel (%p203) target = $region44
        $region43: #{tpu_custom_call.1} parent=35 // pred_region
          %206 = dma.done [#allocation6], 1024
        $region44: #{tpu_custom_call.1} parent=35 // pred_fallthru
          _
        %s207 = sand.u32 %s30, 1
        %s208 = scalar_lea.sflag [#allocation3], %s207
        %s209 = sand.u32 %s30, 1
        %s210 = smul.addr %s209, 512
        %s211 = scalar_lea.vmem [#allocation2], %s210
        %p212 = pneg %p43
        %p213 = pneg %p40
        %p214 = pneg %p64
        %p215 = pneg %p61
        %p216 = pneg %p85
        %p217 = pneg %p82
        %p218 = pneg %p106
        %p219 = pneg %p103
        %p220 = pneg %p132
        %p221 = pneg %p129
        %s222 = sand.u32 %s119, 1
        %s223 = scalar_lea.sflag [#allocation4], %s222
        %s224 = sand.u32 %s119, 1
        %s225 = smul.addr %s224, 8
        %s226 = scalar_lea.vmem [#allocation7], %s225
        %v227 = vld [vmem:[%s198] sm:$0xff]
        %v228 = vld [vmem:[%s198 + $0x8] sm:$0xff]
        %v229 = vld [vmem:[%s198 + $0x10] sm:$0xff]
        %v230 = vld [vmem:[%s198 + $0x18] sm:$0xff]
        %v231 = vld [vmem:[%s198 + $0x20] sm:$0xff]
        %v232 = vld [vmem:[%s198 + $0x28] sm:$0xff]
        %v233 = vld [vmem:[%s198 + $0x30] sm:$0xff]
        %v234 = vld [vmem:[%s198 + $0x38] sm:$0xff]
        %v235 = vld [vmem:[%s198 + $0x40] sm:$0xff]
        %v236 = vld [vmem:[%s198 + $0x48] sm:$0xff]
        %v237 = vld [vmem:[%s198 + $0x50] sm:$0xff]
        %v238 = vld [vmem:[%s198 + $0x58] sm:$0xff]
        %v239 = vld [vmem:[%s198 + $0x60] sm:$0xff]
        %v240 = vld [vmem:[%s198 + $0x68] sm:$0xff]
        %v241 = vld [vmem:[%s198 + $0x70] sm:$0xff]
        %v242 = vld [vmem:[%s198 + $0x78] sm:$0xff]
        %v243 = vld [vmem:[%s198 + $0x80] sm:$0xff]
        %v244 = vld [vmem:[%s198 + $0x88] sm:$0xff]
        %v245 = vld [vmem:[%s198 + $0x90] sm:$0xff]
        %v246 = vld [vmem:[%s198 + $0x98] sm:$0xff]
        %v247 = vld [vmem:[%s198 + $0xa0] sm:$0xff]
        %v248 = vld [vmem:[%s198 + $0xa8] sm:$0xff]
        %v249 = vld [vmem:[%s198 + $0xb0] sm:$0xff]
        %v250 = vld [vmem:[%s198 + $0xb8] sm:$0xff]
        %v251 = vld [vmem:[%s198 + $0xc0] sm:$0xff]
        %v252 = vld [vmem:[%s198 + $0xc8] sm:$0xff]
        %v253 = vld [vmem:[%s198 + $0xd0] sm:$0xff]
        %v254 = vld [vmem:[%s198 + $0xd8] sm:$0xff]
        %v255 = vld [vmem:[%s198 + $0xe0] sm:$0xff]
        %v256 = vld [vmem:[%s198 + $0xe8] sm:$0xff]
        %v257 = vld [vmem:[%s198 + $0xf0] sm:$0xff]
        %v258 = vld [vmem:[%s198 + $0xf8] sm:$0xff]
        %v259 = vld [vmem:[%s198 + $0x100] sm:$0xff]
        %v260 = vld [vmem:[%s198 + $0x108] sm:$0xff]
        %v261 = vld [vmem:[%s198 + $0x110] sm:$0xff]
        %v262 = vld [vmem:[%s198 + $0x118] sm:$0xff]
        %v263 = vld [vmem:[%s198 + $0x120] sm:$0xff]
        %v264 = vld [vmem:[%s198 + $0x128] sm:$0xff]
        %v265 = vld [vmem:[%s198 + $0x130] sm:$0xff]
        %v266 = vld [vmem:[%s198 + $0x138] sm:$0xff]
        %v267 = vld [vmem:[%s198 + $0x140] sm:$0xff]
        %v268 = vld [vmem:[%s198 + $0x148] sm:$0xff]
        %v269 = vld [vmem:[%s198 + $0x150] sm:$0xff]
        %v270 = vld [vmem:[%s198 + $0x158] sm:$0xff]
        %v271 = vld [vmem:[%s198 + $0x160] sm:$0xff]
        %v272 = vld [vmem:[%s198 + $0x168] sm:$0xff]
        %v273 = vld [vmem:[%s198 + $0x170] sm:$0xff]
        %v274 = vld [vmem:[%s198 + $0x178] sm:$0xff]
        %v275 = vld [vmem:[%s198 + $0x180] sm:$0xff]
        %v276 = vld [vmem:[%s198 + $0x188] sm:$0xff]
        %v277 = vld [vmem:[%s198 + $0x190] sm:$0xff]
        %v278 = vld [vmem:[%s198 + $0x198] sm:$0xff]
        %v279 = vld [vmem:[%s198 + $0x1a0] sm:$0xff]
        %v280 = vld [vmem:[%s198 + $0x1a8] sm:$0xff]
        %v281 = vld [vmem:[%s198 + $0x1b0] sm:$0xff]
        %v282 = vld [vmem:[%s198 + $0x1b8] sm:$0xff]
        %v283 = vld [vmem:[%s198 + $0x1c0] sm:$0xff]
        %v284 = vld [vmem:[%s198 + $0x1c8] sm:$0xff]
        %v285 = vld [vmem:[%s198 + $0x1d0] sm:$0xff]
        %v286 = vld [vmem:[%s198 + $0x1d8] sm:$0xff]
        %v287 = vld [vmem:[%s198 + $0x1e0] sm:$0xff]
        %v288 = vld [vmem:[%s198 + $0x1e8] sm:$0xff]
        %v289 = vld [vmem:[%s198 + $0x1f0] sm:$0xff]
        %v290 = vld [vmem:[%s198 + $0x1f8] sm:$0xff]
        %v291 = vld [vmem:[#allocation5] sm:$0xff]
        %v292 = vld [vmem:[#allocation5 + $0x8] sm:$0xff]
        %v293 = vld [vmem:[#allocation5 + $0x10] sm:$0xff]
        %v294 = vld [vmem:[#allocation5 + $0x18] sm:$0xff]
        %v295 = vld [vmem:[#allocation5 + $0x20] sm:$0xff]
        %v296 = vld [vmem:[#allocation5 + $0x28] sm:$0xff]
        %v297 = vld [vmem:[#allocation5 + $0x30] sm:$0xff]
        %v298 = vld [vmem:[#allocation5 + $0x38] sm:$0xff]
        %v307 = vlaneseq
        %v308 = vshrl.u32 %v307, 7
        %v309 = vsub.s32 0, %v308
        %v310 = vrot.slane %v291, %v309
        %v311 = vlaneseq
        %v312 = vshrl.u32 %v311, 7
        %v313 = vsub.s32 1, %v312
        %v314 = vrot.slane %v291, %v313
        %v315 = vlaneseq
        %v316 = vshrl.u32 %v315, 7
        %v317 = vsub.s32 2, %v316
        %v318 = vrot.slane %v291, %v317
        %v319 = vlaneseq
        %v320 = vshrl.u32 %v319, 7
        %v321 = vsub.s32 3, %v320
        %v322 = vrot.slane %v291, %v321
        %v323 = vlaneseq
        %v324 = vshrl.u32 %v323, 7
        %v325 = vsub.s32 4, %v324
        %v326 = vrot.slane %v291, %v325
        %v327 = vlaneseq
        %v328 = vshrl.u32 %v327, 7
        %v329 = vsub.s32 5, %v328
        %v330 = vrot.slane %v291, %v329
        %v331 = vlaneseq
        %v332 = vshrl.u32 %v331, 7
        %v333 = vsub.s32 6, %v332
        %v334 = vrot.slane %v291, %v333
        %v335 = vlaneseq
        %v336 = vshrl.u32 %v335, 7
        %v337 = vsub.s32 7, %v336
        %v338 = vrot.slane %v291, %v337
        %v339 = vlaneseq
        %v340 = vshrl.u32 %v339, 7
        %v341 = vsub.s32 0, %v340
        %v342 = vrot.slane %v292, %v341
        %v343 = vlaneseq
        %v344 = vshrl.u32 %v343, 7
        %v345 = vsub.s32 1, %v344
        %v346 = vrot.slane %v292, %v345
        %v347 = vlaneseq
        %v348 = vshrl.u32 %v347, 7
        %v349 = vsub.s32 2, %v348
        %v350 = vrot.slane %v292, %v349
        %v351 = vlaneseq
        %v352 = vshrl.u32 %v351, 7
        %v353 = vsub.s32 3, %v352
        %v354 = vrot.slane %v292, %v353
        %v355 = vlaneseq
        %v356 = vshrl.u32 %v355, 7
        %v357 = vsub.s32 4, %v356
        %v358 = vrot.slane %v292, %v357
        %v359 = vlaneseq
        %v360 = vshrl.u32 %v359, 7
        %v361 = vsub.s32 5, %v360
        %v362 = vrot.slane %v292, %v361
        %v363 = vlaneseq
        %v364 = vshrl.u32 %v363, 7
        %v365 = vsub.s32 6, %v364
        %v366 = vrot.slane %v292, %v365
        %v367 = vlaneseq
        %v368 = vshrl.u32 %v367, 7
        %v369 = vsub.s32 7, %v368
        %v370 = vrot.slane %v292, %v369
        %v371 = vlaneseq
        %v372 = vshrl.u32 %v371, 7
        %v373 = vsub.s32 0, %v372
        %v374 = vrot.slane %v293, %v373
        %v375 = vlaneseq
        %v376 = vshrl.u32 %v375, 7
        %v377 = vsub.s32 1, %v376
        %v378 = vrot.slane %v293, %v377
        %v379 = vlaneseq
        %v380 = vshrl.u32 %v379, 7
        %v381 = vsub.s32 2, %v380
        %v382 = vrot.slane %v293, %v381
        %v383 = vlaneseq
        %v384 = vshrl.u32 %v383, 7
        %v385 = vsub.s32 3, %v384
        %v386 = vrot.slane %v293, %v385
        %v387 = vlaneseq
        %v388 = vshrl.u32 %v387, 7
        %v389 = vsub.s32 4, %v388
        %v390 = vrot.slane %v293, %v389
        %v391 = vlaneseq
        %v392 = vshrl.u32 %v391, 7
        %v393 = vsub.s32 5, %v392
        %v394 = vrot.slane %v293, %v393
        %v395 = vlaneseq
        %v396 = vshrl.u32 %v395, 7
        %v397 = vsub.s32 6, %v396
        %v398 = vrot.slane %v293, %v397
        %v399 = vlaneseq
        %v400 = vshrl.u32 %v399, 7
        %v401 = vsub.s32 7, %v400
        %v402 = vrot.slane %v293, %v401
        %v403 = vlaneseq
        %v404 = vshrl.u32 %v403, 7
        %v405 = vsub.s32 0, %v404
        %v406 = vrot.slane %v294, %v405
        %v407 = vlaneseq
        %v408 = vshrl.u32 %v407, 7
        %v409 = vsub.s32 1, %v408
        %v410 = vrot.slane %v294, %v409
        %v411 = vlaneseq
        %v412 = vshrl.u32 %v411, 7
        %v413 = vsub.s32 2, %v412
        %v414 = vrot.slane %v294, %v413
        %v415 = vlaneseq
        %v416 = vshrl.u32 %v415, 7
        %v417 = vsub.s32 3, %v416
        %v418 = vrot.slane %v294, %v417
        %v419 = vlaneseq
        %v420 = vshrl.u32 %v419, 7
        %v421 = vsub.s32 4, %v420
        %v422 = vrot.slane %v294, %v421
        %v423 = vlaneseq
        %v424 = vshrl.u32 %v423, 7
        %v425 = vsub.s32 5, %v424
        %v426 = vrot.slane %v294, %v425
        %v427 = vlaneseq
        %v428 = vshrl.u32 %v427, 7
        %v429 = vsub.s32 6, %v428
        %v430 = vrot.slane %v294, %v429
        %v431 = vlaneseq
        %v432 = vshrl.u32 %v431, 7
        %v433 = vsub.s32 7, %v432
        %v434 = vrot.slane %v294, %v433
        %v435 = vlaneseq
        %v436 = vshrl.u32 %v435, 7
        %v437 = vsub.s32 0, %v436
        %v438 = vrot.slane %v295, %v437
        %v439 = vlaneseq
        %v440 = vshrl.u32 %v439, 7
        %v441 = vsub.s32 1, %v440
        %v442 = vrot.slane %v295, %v441
        %v443 = vlaneseq
        %v444 = vshrl.u32 %v443, 7
        %v445 = vsub.s32 2, %v444
        %v446 = vrot.slane %v295, %v445
        %v447 = vlaneseq
        %v448 = vshrl.u32 %v447, 7
        %v449 = vsub.s32 3, %v448
        %v450 = vrot.slane %v295, %v449
        %v451 = vlaneseq
        %v452 = vshrl.u32 %v451, 7
        %v453 = vsub.s32 4, %v452
        %v454 = vrot.slane %v295, %v453
        %v455 = vlaneseq
        %v456 = vshrl.u32 %v455, 7
        %v457 = vsub.s32 5, %v456
        %v458 = vrot.slane %v295, %v457
        %v459 = vlaneseq
        %v460 = vshrl.u32 %v459, 7
        %v461 = vsub.s32 6, %v460
        %v462 = vrot.slane %v295, %v461
        %v463 = vlaneseq
        %v464 = vshrl.u32 %v463, 7
        %v465 = vsub.s32 7, %v464
        %v466 = vrot.slane %v295, %v465
        %v467 = vlaneseq
        %v468 = vshrl.u32 %v467, 7
        %v469 = vsub.s32 0, %v468
        %v470 = vrot.slane %v296, %v469
        %v471 = vlaneseq
        %v472 = vshrl.u32 %v471, 7
        %v473 = vsub.s32 1, %v472
        %v474 = vrot.slane %v296, %v473
        %v475 = vlaneseq
        %v476 = vshrl.u32 %v475, 7
        %v477 = vsub.s32 2, %v476
        %v478 = vrot.slane %v296, %v477
        %v479 = vlaneseq
        %v480 = vshrl.u32 %v479, 7
        %v481 = vsub.s32 3, %v480
        %v482 = vrot.slane %v296, %v481
        %v483 = vlaneseq
        %v484 = vshrl.u32 %v483, 7
        %v485 = vsub.s32 4, %v484
        %v486 = vrot.slane %v296, %v485
        %v487 = vlaneseq
        %v488 = vshrl.u32 %v487, 7
        %v489 = vsub.s32 5, %v488
        %v490 = vrot.slane %v296, %v489
        %v491 = vlaneseq
        %v492 = vshrl.u32 %v491, 7
        %v493 = vsub.s32 6, %v492
        %v494 = vrot.slane %v296, %v493
        %v495 = vlaneseq
        %v496 = vshrl.u32 %v495, 7
        %v497 = vsub.s32 7, %v496
        %v498 = vrot.slane %v296, %v497
        %v499 = vlaneseq
        %v500 = vshrl.u32 %v499, 7
        %v501 = vsub.s32 0, %v500
        %v502 = vrot.slane %v297, %v501
        %v503 = vlaneseq
        %v504 = vshrl.u32 %v503, 7
        %v505 = vsub.s32 1, %v504
        %v506 = vrot.slane %v297, %v505
        %v507 = vlaneseq
        %v508 = vshrl.u32 %v507, 7
        %v509 = vsub.s32 2, %v508
        %v510 = vrot.slane %v297, %v509
        %v511 = vlaneseq
        %v512 = vshrl.u32 %v511, 7
        %v513 = vsub.s32 3, %v512
        %v514 = vrot.slane %v297, %v513
        %v515 = vlaneseq
        %v516 = vshrl.u32 %v515, 7
        %v517 = vsub.s32 4, %v516
        %v518 = vrot.slane %v297, %v517
        %v519 = vlaneseq
        %v520 = vshrl.u32 %v519, 7
        %v521 = vsub.s32 5, %v520
        %v522 = vrot.slane %v297, %v521
        %v523 = vlaneseq
        %v524 = vshrl.u32 %v523, 7
        %v525 = vsub.s32 6, %v524
        %v526 = vrot.slane %v297, %v525
        %v527 = vlaneseq
        %v528 = vshrl.u32 %v527, 7
        %v529 = vsub.s32 7, %v528
        %v530 = vrot.slane %v297, %v529
        %v531 = vlaneseq
        %v532 = vshrl.u32 %v531, 7
        %v533 = vsub.s32 0, %v532
        %v534 = vrot.slane %v298, %v533
        %v535 = vlaneseq
        %v536 = vshrl.u32 %v535, 7
        %v537 = vsub.s32 1, %v536
        %v538 = vrot.slane %v298, %v537
        %v539 = vlaneseq
        %v540 = vshrl.u32 %v539, 7
        %v541 = vsub.s32 2, %v540
        %v542 = vrot.slane %v298, %v541
        %v543 = vlaneseq
        %v544 = vshrl.u32 %v543, 7
        %v545 = vsub.s32 3, %v544
        %v546 = vrot.slane %v298, %v545
        %v547 = vlaneseq
        %v548 = vshrl.u32 %v547, 7
        %v549 = vsub.s32 4, %v548
        %v550 = vrot.slane %v298, %v549
        %v551 = vlaneseq
        %v552 = vshrl.u32 %v551, 7
        %v553 = vsub.s32 5, %v552
        %v554 = vrot.slane %v298, %v553
        %v555 = vlaneseq
        %v556 = vshrl.u32 %v555, 7
        %v557 = vsub.s32 6, %v556
        %v558 = vrot.slane %v298, %v557
        %v559 = vlaneseq
        %v560 = vshrl.u32 %v559, 7
        %v561 = vsub.s32 7, %v560
        %v562 = vrot.slane %v298, %v561
        %v627 = vmul.f32 %v227, %v310
        %v628 = vmul.f32 %v228, %v314
        %v629 = vmul.f32 %v229, %v318
        %v630 = vmul.f32 %v230, %v322
        %v631 = vmul.f32 %v231, %v326
        %v632 = vmul.f32 %v232, %v330
        %v633 = vmul.f32 %v233, %v334
        %v634 = vmul.f32 %v234, %v338
        %v635 = vmul.f32 %v235, %v342
        %v636 = vmul.f32 %v236, %v346
        %v637 = vmul.f32 %v237, %v350
        %v638 = vmul.f32 %v238, %v354
        %v639 = vmul.f32 %v239, %v358
        %v640 = vmul.f32 %v240, %v362
        %v641 = vmul.f32 %v241, %v366
        %v642 = vmul.f32 %v242, %v370
        %v643 = vmul.f32 %v243, %v374
        %v644 = vmul.f32 %v244, %v378
        %v645 = vmul.f32 %v245, %v382
        %v646 = vmul.f32 %v246, %v386
        %v647 = vmul.f32 %v247, %v390
        %v648 = vmul.f32 %v248, %v394
        %v649 = vmul.f32 %v249, %v398
        %v650 = vmul.f32 %v250, %v402
        %v651 = vmul.f32 %v251, %v406
        %v652 = vmul.f32 %v252, %v410
        %v653 = vmul.f32 %v253, %v414
        %v654 = vmul.f32 %v254, %v418
        %v655 = vmul.f32 %v255, %v422
        %v656 = vmul.f32 %v256, %v426
        %v657 = vmul.f32 %v257, %v430
        %v658 = vmul.f32 %v258, %v434
        %v659 = vmul.f32 %v259, %v438
        %v660 = vmul.f32 %v260, %v442
        %v661 = vmul.f32 %v261, %v446
        %v662 = vmul.f32 %v262, %v450
        %v663 = vmul.f32 %v263, %v454
        %v664 = vmul.f32 %v264, %v458
        %v665 = vmul.f32 %v265, %v462
        %v666 = vmul.f32 %v266, %v466
        %v667 = vmul.f32 %v267, %v470
        %v668 = vmul.f32 %v268, %v474
        %v669 = vmul.f32 %v269, %v478
        %v670 = vmul.f32 %v270, %v482
        %v671 = vmul.f32 %v271, %v486
        %v672 = vmul.f32 %v272, %v490
        %v673 = vmul.f32 %v273, %v494
        %v674 = vmul.f32 %v274, %v498
        %v675 = vmul.f32 %v275, %v502
        %v676 = vmul.f32 %v276, %v506
        %v677 = vmul.f32 %v277, %v510
        %v678 = vmul.f32 %v278, %v514
        %v679 = vmul.f32 %v279, %v518
        %v680 = vmul.f32 %v280, %v522
        %v681 = vmul.f32 %v281, %v526
        %v682 = vmul.f32 %v282, %v530
        %v683 = vmul.f32 %v283, %v534
        %v684 = vmul.f32 %v284, %v538
        %v685 = vmul.f32 %v285, %v542
        %v686 = vmul.f32 %v286, %v546
        %v687 = vmul.f32 %v287, %v550
        %v688 = vmul.f32 %v288, %v554
        %v689 = vmul.f32 %v289, %v558
        %v690 = vmul.f32 %v290, %v562
        %v691 = vadd.f32 %v627, %v628
        %v692 = vadd.f32 %v691, %v629
        %v693 = vadd.f32 %v692, %v630
        %v694 = vadd.f32 %v693, %v631
        %v695 = vadd.f32 %v694, %v632
        %v696 = vadd.f32 %v695, %v633
        %v697 = vadd.f32 %v696, %v634
        %v698 = vadd.f32 %v697, %v635
        %v699 = vadd.f32 %v698, %v636
        %v700 = vadd.f32 %v699, %v637
        %v701 = vadd.f32 %v700, %v638
        %v702 = vadd.f32 %v701, %v639
        %v703 = vadd.f32 %v702, %v640
        %v704 = vadd.f32 %v703, %v641
        %v705 = vadd.f32 %v704, %v642
        %v706 = vadd.f32 %v705, %v643
        %v707 = vadd.f32 %v706, %v644
        %v708 = vadd.f32 %v707, %v645
        %v709 = vadd.f32 %v708, %v646
        %v710 = vadd.f32 %v709, %v647
        %v711 = vadd.f32 %v710, %v648
        %v712 = vadd.f32 %v711, %v649
        %v713 = vadd.f32 %v712, %v650
        %v714 = vadd.f32 %v713, %v651
        %v715 = vadd.f32 %v714, %v652
        %v716 = vadd.f32 %v715, %v653
        %v717 = vadd.f32 %v716, %v654
        %v718 = vadd.f32 %v717, %v655
        %v719 = vadd.f32 %v718, %v656
        %v720 = vadd.f32 %v719, %v657
        %v721 = vadd.f32 %v720, %v658
        %v722 = vadd.f32 %v721, %v659
        %v723 = vadd.f32 %v722, %v660
        %v724 = vadd.f32 %v723, %v661
        %v725 = vadd.f32 %v724, %v662
        %v726 = vadd.f32 %v725, %v663
        %v727 = vadd.f32 %v726, %v664
        %v728 = vadd.f32 %v727, %v665
        %v729 = vadd.f32 %v728, %v666
        %v730 = vadd.f32 %v729, %v667
        %v731 = vadd.f32 %v730, %v668
        %v732 = vadd.f32 %v731, %v669
        %v733 = vadd.f32 %v732, %v670
        %v734 = vadd.f32 %v733, %v671
        %v735 = vadd.f32 %v734, %v672
        %v736 = vadd.f32 %v735, %v673
        %v737 = vadd.f32 %v736, %v674
        %v738 = vadd.f32 %v737, %v675
        %v739 = vadd.f32 %v738, %v676
        %v740 = vadd.f32 %v739, %v677
        %v741 = vadd.f32 %v740, %v678
        %v742 = vadd.f32 %v741, %v679
        %v743 = vadd.f32 %v742, %v680
        %v744 = vadd.f32 %v743, %v681
        %v745 = vadd.f32 %v744, %v682
        %v746 = vadd.f32 %v745, %v683
        %v747 = vadd.f32 %v746, %v684
        %v748 = vadd.f32 %v747, %v685
        %v749 = vadd.f32 %v748, %v686
        %v750 = vadd.f32 %v749, %v687
        %v751 = vadd.f32 %v750, %v688
        %v752 = vadd.f32 %v751, %v689
        %v753 = vadd.f32 %v752, %v690
        %754 = vadd.xlane.f32.xlu0 %v753
        %v755 = vpop.xlane.xlu0 %754
        %v756 = vld [vmem:[%s2] sm:$0x1]
        %v758 = vlaneseq
        %v759 = vshrl.u32 %v758, 7
        %v760 = vsub.s32 0, %v759
        %v761 = vrot.slane %v756, %v760
        %v763 = vsub.f32 %v755, %v761
        %v764 = vmul.f32 %v763, 1.442695
        %v765 = vpow.pop %v764
        %v766 = vadd.f32 %v765, 1.0
        %v767 = vrcp.pop %v766
        %v768 = vmul.f32 1.0, %v767
        %v769 = vld [vmem:[%s3] sm:$0x1]
        %v771 = vlaneseq
        %v772 = vshrl.u32 %v771, 7
        %v773 = vsub.s32 0, %v772
        %v774 = vrot.slane %v769, %v773
        %v776 = vsub.f32 %v755, %v774
        %v777 = vmul.f32 %v776, 1.442695
        %v778 = vpow.pop %v777
        %v779 = vadd.f32 %v778, 1.0
        %v780 = vrcp.pop %v779
        %v781 = vmul.f32 1.0, %v780
        %v782 = vsub.f32 %v768, %v781
        %783 = vst [vmem:[%s226] sm:$0xff] %v782
        %s784 = sand.u32 %s119, 1
        %s785 = scalar_lea.sflag [#allocation4], %s784
        %s786 = sand.u32 %s119, 1
        %s787 = smul.addr %s786, 8
        %s788 = scalar_lea.vmem [#allocation7], %s787
        // Predicated region
        $region45: #{tpu_custom_call.1} parent=35 // pred_check
          %p789 = pneg %p129
        $region46: #{tpu_custom_call.1} parent=35 // pred_check_branch
          %791 = sbr.rel (%p789) target = $region48
        $region47: #{tpu_custom_call.1} parent=35 // pred_region
          %s793 = ssub.s32 128, 128
          %794 = vsyncadd %s785, %s793
          %s795 = smul.addr %s22, 128
          %s796 = scalar_lea.hbm %s4, %s795
          %s798 = sshll.u32 %s788, 4
          %s799 = int_to_ptr.vmem [resolvable:$true] %s798
          %801 = dma.vmem_to_hbm [thread:$0]  %s799, 128, %s796, %s785
        $region48: #{tpu_custom_call.1} parent=35 // pred_fallthru
          _
      $region36: #{tpu_custom_call.1} parent=5 // pred_fallthru
        _
      %p802 = scmp.le.s32.totalorder 2, %s17
      // Predicated region
      $region49: #{tpu_custom_call.1} parent=5 // pred_check
        %p803 = pneg %p802
      $region50: #{tpu_custom_call.1} parent=5 // pred_check_branch
        %805 = sbr.rel (%p803) target = $region52
      $region51: #{tpu_custom_call.1} parent=5 // pred_region
        %s806 = ssub.s32 %s17, 2
        // Predicated region
        $region53: #{tpu_custom_call.1} parent=51 // pred_check
          %p807 = pneg %p135
        $region54: #{tpu_custom_call.1} parent=51 // pred_check_branch
          %809 = sbr.rel (%p807) target = $region56
        $region55: #{tpu_custom_call.1} parent=51 // pred_region
          %s810 = sand.u32 %s120, 1
          %s811 = scalar_lea.sflag [#allocation4], %s810
          %s812 = sand.u32 %s120, 1
          %s813 = smul.addr %s812, 8
          %s814 = scalar_lea.vmem [#allocation7], %s813
          %815 = dma.done %s811, 128
        $region56: #{tpu_custom_call.1} parent=51 // pred_fallthru
          _
      $region52: #{tpu_custom_call.1} parent=5 // pred_fallthru
        _
    $region6: #{tpu_custom_call.1} parent=1 // loop_footer
      %s21 = sadd.s32 1, %s17
    $region7: #{tpu_custom_call.1} parent=1 // loop_footer_branch
      %16 = sbr.rel target = $region3
    $region8: #{tpu_custom_call.1} parent=1 // loop_exit
      _
    %816 = vsyncpa [#allocation3], 1
    %s817 = scalar_lea.sflag [#allocation3], 1
    %818 = vsyncpa %s817, 1
    %819 = vsyncpa [#allocation6], 1
    %820 = vsyncpa [#allocation4], 1
    %s821 = scalar_lea.sflag [#allocation4], 1
    %822 = vsyncpa %s821, 1

</llo_original>
